<compile_context>
chip_gen: v6e
topology: v6e:2x2x1
jax: 0.10.0
libtpu: 0.0.40
codegen_flags: <defaults>
</compile_context>

<pallas_src>
import functools

import jax
import jax.numpy as jnp
from jax.experimental import pallas as pl
from jax.experimental.pallas import tpu as pltpu

_LANES = 128
_TARGET_BLOCK_BYTES = 2 << 20      # ~2 MiB per input block per grid step
_MAX_VMEM_FRACTION = 0.75          # never ask Mosaic for more than this


def _round_up(x, m):
    return (x + m - 1) // m * m


def _round_down(x, m):
    return x // m * m


def _sse_kernel(pred_ref, label_ref, out_ref, *, acc_lanes, n_slices):
    """Accumulate per-row, per-lane-group partial sums of (pred - label)^2.

    out_ref block: (1, R_pad, acc_lanes) f32, resident across the trailing
    ("arbitrary") reduction axis of the grid.
    """
    k = pl.program_id(1)

    @pl.when(k == 0)
    def _init():
        out_ref[...] = jnp.zeros_like(out_ref)

    # Short static loop over wide (acc_lanes <= 512) slices.  Each body is a
    # self-contained read-modify-write of the resident accumulator; with
    # R_pad ~ 64-128 rows every vadd spans 16-64 independent vregs, so all
    # VALU slots stay fed and no serial dependency chain is exposed.
    for s in range(n_slices):
        lo = s * acc_lanes
        d = (pred_ref[:, lo:lo + acc_lanes].astype(jnp.float32)
             - label_ref[:, lo:lo + acc_lanes].astype(jnp.float32))
        out_ref[0, :, :] = out_ref[0, :, :] + d * d


def mask_weighted_mse(pred, label, mask, *, min_area=1000.0,
                      chunk=8192, target_rows=128):
    """pred: (B,C,H,W); label: reshapeable to pred.shape; mask: (B,Cm,H,W)."""
    B, C, H, W = pred.shape
    label = jnp.reshape(label, pred.shape)             # label.view(pred.size())
    N = C * H * W

    # --- denominator: tiny, computed in XLA so the mask never enters VMEM ---
    m_sum = jnp.sum(mask[:, 0, :, :].astype(jnp.float32), axis=(1, 2))   # (B,)
    denom = jnp.float32(C) * jnp.maximum(m_sum, jnp.float32(min_area))   # (B,)

    itemsize = max(pred.dtype.itemsize, label.dtype.itemsize)
    # Sublane alignment: f32 tiles are (8,128); bf16/f16 pack 16 sublanes.
    sub = 8 if itemsize >= 4 else (16 if itemsize == 2 else 32)

    # --- fold the reduction axis into sublane rows (target ~128 rows) -------
    # More rows => bigger DMA blocks per step and lots of independent
    # accumulator vregs; capped so each fold still holds >= 128 columns.
    F = max(1, min(max(1, target_rows // B), pl.cdiv(N, _LANES)))
    R = B * F
    R_pad = _round_up(R, sub)
    cols0 = pl.cdiv(N, F)                    # columns per fold (pre-padding)

    # --- column tiling: guaranteed P=2 parallel split, >=2 steps per split --
    P = 2
    chunk = max(_LANES, _round_down(int(chunk), _LANES))
    tn_bytes = max(_LANES,
                   _round_down(_TARGET_BLOCK_BYTES // (R_pad * itemsize), _LANES))
    tn_steps = max(_LANES, _round_down(cols0 // (2 * P), _LANES))
    tn = max(_LANES, min(tn_bytes, chunk, tn_steps))
    cols = _round_up(cols0, P * tn)          # multiple of 2*tn -> P=2 always
    n_inner = cols // (P * tn)               # reduction steps per split (>=1)

    # Wide accumulator lane-groups: fewer, fatter vadds per tile.
    acc_lanes = 512 if tn % 512 == 0 else (256 if tn % 256 == 0 else _LANES)
    n_slices = tn // acc_lanes

    def _prep(x):
        x = jnp.reshape(x, (B, N))
        pad_cols = F * cols - N
        if pad_cols:
            x = jnp.pad(x, ((0, 0), (0, pad_cols)))       # zeros -> 0 SSE
        x = jnp.reshape(x, (R, cols))
        if R_pad != R:
            x = jnp.pad(x, ((0, R_pad - R), (0, 0)))
        return x

    pred2d = _prep(pred)
    label2d = _prep(label)

    # --- VMEM budget: 2 inputs x 2 pipeline buffers + resident accumulator --
    vmem_need = (2 * R_pad * tn * (pred2d.dtype.itemsize + label2d.dtype.itemsize)
                 + 2 * R_pad * acc_lanes * 4)
    try:
        vmem_cap = int(pltpu.get_tpu_info().vmem_capacity_bytes)
    except Exception:
        vmem_cap = 64 << 20                  # v7x floor (v5e/v6e have 128 MiB)
    vmem_limit = int(min(_MAX_VMEM_FRACTION * vmem_cap,
                         max(16 << 20, 4 * vmem_need)))
    vmem_limit = max(vmem_limit, vmem_need + (2 << 20))
    vmem_limit = int(min(vmem_limit, 0.9 * vmem_cap))

    kernel = functools.partial(_sse_kernel, acc_lanes=acc_lanes,
                               n_slices=n_slices)

    partials = pl.pallas_call(
        kernel,
        out_shape=jax.ShapeDtypeStruct((P, R_pad, acc_lanes), jnp.float32),
        grid_spec=pltpu.PrefetchScalarGridSpec(
            num_scalar_prefetch=0,
            grid=(P, n_inner),
            in_specs=[
                pl.BlockSpec((R_pad, tn), lambda p, k: (0, p * n_inner + k)),
                pl.BlockSpec((R_pad, tn), lambda p, k: (0, p * n_inner + k)),
            ],
            out_specs=pl.BlockSpec((1, R_pad, acc_lanes),
                                   lambda p, k: (p, 0, 0)),
        ),
        compiler_params=pltpu.CompilerParams(
            # Leading "parallel" axis shards the two column halves across
            # v7x's 2 TensorCores; on single-TC v5e/v6e it is a cheap loop.
            dimension_semantics=("parallel", "arbitrary"),
            vmem_limit_bytes=vmem_limit),
    )(pred2d, label2d)

    # Tiny epilogue: collapse parallel splits, lanes and folds, then divide.
    sse_rows = jnp.sum(partials, axis=(0, 2))                    # (R_pad,)
    sse = jnp.sum(jnp.reshape(sse_rows[:R], (B, F)), axis=1)     # (B,)
    return sse / denom


def _reference(pred, label, mask, min_area=1000.0):
    pred = pred.astype(jnp.float32)
    label = jnp.reshape(label, pred.shape).astype(jnp.float32)
    loss = (pred - label) ** 2
    m_sum = jnp.sum(mask[:, 0:1, :, :].astype(jnp.float32), axis=(1, 2, 3))
    denom = pred.shape[1] * jnp.maximum(m_sum, jnp.float32(min_area))
    return jnp.sum(loss, axis=(1, 2, 3)) / denom


if __name__ == "__main__":
    key = jax.random.PRNGKey(0)
    configs = [
        # (B, C, H, W, dtype,        min_area, chunk, target_rows, flat_label)
        (2, 4, 16, 16, jnp.float32,  1000.0,   8192,  128, False),  # basic
        (2, 4, 16, 16, jnp.float32,  100.0,    8192,  128, True),   # flat label view
        (3, 4, 16, 16, jnp.float32,  1000.0,   8192,  128, False),  # B=3 folding
        (2, 4, 32, 32, jnp.bfloat16, 1000.0,   8192,  128, False),  # bf16 streaming
        (2, 4, 64, 64, jnp.float32,  1000.0,   8192,  8,   False),  # 2 steps x 2 slices
        (2, 4, 64, 64, jnp.float32,  1000.0,   256,   8,   False),  # 8-step accumulation
    ]
    for (B, C, H, W, dt, min_area, chunk, tr, flat) in configs:
        key, k1, k2, k3 = jax.random.split(key, 4)
        pred = jax.random.normal(k1, (B, C, H, W), dtype=jnp.float32).astype(dt)
        label = jax.random.normal(k2, (B, C, H, W), dtype=jnp.float32).astype(dt)
        mask = (jax.random.uniform(k3, (B, 2, H, W)) > 0.5).astype(jnp.float32)

        label_in = label.reshape(B, -1) if flat else label
        out = jax.block_until_ready(
            mask_weighted_mse(pred, label_in, mask, min_area=min_area,
                              chunk=chunk, target_rows=tr))
        ref = _reference(pred, label, mask, min_area=min_area)
        assert out.shape == (B,), out.shape
        assert jnp.allclose(out, ref, rtol=2e-5, atol=1e-6), (dt, out, ref)
    print("KERNEL_OK")
</pallas_src>

<mosaic_0001>
module attributes {stable_mosaic.version = 11 : i64} {
  func.func @_sse_kernel(%arg0: i32, %arg1: i32, %arg2: memref<16x128xf32, #tpu.memory_space<vmem>>, %arg3: memref<16x128xf32, #tpu.memory_space<vmem>>, %arg4: memref<1x16x128xf32, #tpu.memory_space<vmem>>) attributes {dimension_semantics = [#tpu.dimension_semantics<parallel>, #tpu.dimension_semantics<arbitrary>], iteration_bounds = array<i64: 2, 1>, scalar_prefetch = 0 : i64, scratch_operands = 0 : i64, tpu.core_type = #tpu.core_type<tc>, window_params = [{transform_indices = @transform_0, window_bounds = array<i64: 16, 128>}, {transform_indices = @transform_1, window_bounds = array<i64: 16, 128>}, {transform_indices = @transform_2, window_bounds = array<i64: 1, 16, 128>}]} {
    %c0_i32 = arith.constant 0 : i32
    %0 = arith.cmpi eq, %arg1, %c0_i32 : i32
    %1 = arith.extui %0 : i1 to i32
    %c0_i32_0 = arith.constant 0 : i32
    %2 = arith.cmpi ne, %1, %c0_i32_0 : i32
    scf.if %2 {
      %cst = arith.constant 0.000000e+00 : f32
      %13 = vector.broadcast %cst : f32 to vector<1x16x128xf32>
      %c0_10 = arith.constant 0 : index
      %c0_11 = arith.constant 0 : index
      %c0_12 = arith.constant 0 : index
      %14 = vector.load %arg4[%c0_10, %c0_11, %c0_12] : memref<1x16x128xf32, #tpu.memory_space<vmem>>, vector<1x16x128xf32>
      tpu.vector_store %arg4[%c0_10, %c0_11, %c0_12], %13 {strides = array<i32>} : memref<1x16x128xf32, #tpu.memory_space<vmem>>, vector<1x16x128xf32>,
    } else {
    }
    %c0 = arith.constant 0 : index
    %c0_1 = arith.constant 0 : index
    %3 = vector.load %arg2[%c0, %c0_1] : memref<16x128xf32, #tpu.memory_space<vmem>>, vector<16x128xf32>
    %c0_2 = arith.constant 0 : index
    %c0_3 = arith.constant 0 : index
    %4 = vector.load %arg3[%c0_2, %c0_3] : memref<16x128xf32, #tpu.memory_space<vmem>>, vector<16x128xf32>
    %5 = arith.subf %3, %4 : vector<16x128xf32>
    %c0_4 = arith.constant 0 : index
    %c0_5 = arith.constant 0 : index
    %c0_6 = arith.constant 0 : index
    %6 = vector.load %arg4[%c0_4, %c0_5, %c0_6] : memref<1x16x128xf32, #tpu.memory_space<vmem>>, vector<1x16x128xf32>
    %7 = vector.shape_cast %6 : vector<1x16x128xf32> to vector<16x128xf32>
    %8 = arith.mulf %5, %5 : vector<16x128xf32>
    %9 = arith.addf %7, %8 : vector<16x128xf32>
    %c0_7 = arith.constant 0 : index
    %c0_8 = arith.constant 0 : index
    %c0_9 = arith.constant 0 : index
    %10 = vector.load %arg4[%c0_7, %c0_8, %c0_9] : memref<1x16x128xf32, #tpu.memory_space<vmem>>, vector<1x16x128xf32>
    %11 = vector.shape_cast %10 : vector<1x16x128xf32> to vector<16x128xf32>
    %12 = vector.shape_cast %9 : vector<16x128xf32> to vector<1x16x128xf32>
    tpu.vector_store %arg4[%c0_7, %c0_8, %c0_9], %12 {strides = array<i32>} : memref<1x16x128xf32, #tpu.memory_space<vmem>>, vector<1x16x128xf32>,
    return
  }
  func.func @transform_0(%arg0: i32, %arg1: i32) -> (i32, i32) {
    %c1_i32 = arith.constant 1 : i32
    %0 = arith.muli %arg0, %c1_i32 : i32
    %1 = arith.addi %0, %arg1 : i32
    %c0_i32 = arith.constant 0 : i32
    %c0_i32_0 = arith.constant 0 : i32
    return %c0_i32, %1 : i32, i32
  }
  func.func @transform_1(%arg0: i32, %arg1: i32) -> (i32, i32) {
    %c1_i32 = arith.constant 1 : i32
    %0 = arith.muli %arg0, %c1_i32 : i32
    %1 = arith.addi %0, %arg1 : i32
    %c0_i32 = arith.constant 0 : i32
    %c0_i32_0 = arith.constant 0 : i32
    return %c0_i32, %1 : i32, i32
  }
  func.func @transform_2(%arg0: i32, %arg1: i32) -> (i32, i32, i32) {
    %c0_i32 = arith.constant 0 : i32
    %c0_i32_0 = arith.constant 0 : i32
    %c0_i32_1 = arith.constant 0 : i32
    return %arg0, %c0_i32, %c0_i32_0 : i32, i32, i32
  }
}

</mosaic_0001>

<llo_original>
// kernel: tpu_custom_call.1
$region0: #{tpu_custom_call.1}
  #allocation0 [shape = 'u32[]', space=smem, size = 0x4, offset = 0x4, fixed_abs, tag = 'smem constant byte address 0x4 - core index']
  #allocation1 [shape = 'u32[144,128]{1,0:T(1,128)}', space=vmem, size = 0x12000, scoped, tag = 'internal scratch']
  %s0 = inlined_call_operand.hbm [shape: f32[16,256], index: 0, kind: input, shape index: {}]
  %s1 = inlined_call_operand.hbm [shape: f32[16,256], index: 1, kind: input, shape index: {}]
  %s2 = inlined_call_operand.hbm [shape: f32[2,16,128], index: 2, kind: output, shape index: {}]
  %s3 = sld [smem:[#allocation0]]
  $region53: #{tpu_custom_call.1} parent=0
    _
  %s5 = ssub.s32 1, %s3
  %s6 = scalar_select 0, %s5, %s3
  $region1: #{tpu_custom_call.1} parent=0
    #allocation2 [shape = 'u8[16384]{0}', space=vmem, size = 0x4000, scoped, tag = 'input window, operand 0']
    #allocation3 [shape = 's32[2]{0}', space=sflag, size = 0x8, scoped, tag = 'scoped memory for tpu_custom_call.1']
    #allocation4 [shape = 's32[2]{0}', space=sflag, size = 0x8, scoped, tag = 'scoped memory for tpu_custom_call.1']
    #allocation5 [shape = 'u8[16384]{0}', space=vmem, size = 0x4000, scoped, tag = 'input window, operand 1']
    #allocation6 [shape = 's32[2]{0}', space=sflag, size = 0x8, scoped, tag = 'scoped memory for tpu_custom_call.1']
    #allocation7 [shape = 'u8[16384]{0}', space=vmem, size = 0x4000, scoped, tag = 'output window, operand 0']
    %7 = vsyncpa [#allocation3], 0
    %s8 = scalar_lea.sflag [#allocation3], 1
    %9 = vsyncpa %s8, 0
    %10 = vsyncpa [#allocation6], 0
    %s11 = scalar_lea.sflag [#allocation6], 1
    %12 = vsyncpa %s11, 0
    %13 = vsyncpa [#allocation4], 0
    %s14 = scalar_lea.sflag [#allocation4], 1
    %15 = vsyncpa %s14, 0
    loop: start=0, step=1, limit=4
    $region2: #{tpu_custom_call.1} parent=1 // loop_pre_header
      _
    $region3: #{tpu_custom_call.1} parent=1 // loop_header
      %s17 = sphi 0, %s21
      %p18 = scmp.ge.s32.totalorder %s17, 4
      %s24 = sphi 0, %s36
      %s25 = sphi 0, %s32
      %s26 = sphi 0, %s24
      %s27 = sphi 0, %s25
      %s28 = sphi 0, %s26
      %s29 = sphi 0, %s27
      %s41 = sphi 0, %s43
      %s44 = sphi 0, %s41
      %s45 = sphi 0, %s44
      %s61 = sphi 0, %s45
      %s69 = sphi 0, %s71
      %s72 = sphi 0, %s69
      %s73 = sphi 0, %s72
      %s89 = sphi 0, %s73
      %s95 = sphi 0, %s97
      %s98 = sphi 0, %s95
      %s99 = sphi 0, %s98
      %s115 = sphi 0, %s99
    $region4: #{tpu_custom_call.1} parent=1 // loop_header_branch
      %20 = sbr.rel (%p18) target = $region8
    $region5: #{tpu_custom_call.1} parent=1 // loop_body
      %s22 = ssub.s32 %s17, 1
      %s23 = ssub.s32 %s17, 2
      %s30 = sadd.s32 1, %s25
      %p31 = scmp.ge.s32.totalorder %s30, 1
      %s32 = scalar_select %p31, 0, %s30
      %s33 = sadd.s32 1, %s24
      %s34 = scalar_select %p31, %s33, %s24
      %p35 = scmp.ge.s32.totalorder %s34, 2
      %s36 = scalar_select %p35, 0, %s34
      %s37 = sadd.s32 %s24, %s25
      %s38 = sadd.s32 %s36, %s32
      %s39 = ssub.s32 %s37, %s38
      %p40 = scmp.eq.s32.totalorder %s39, 0
      %s42 = sadd.s32 %s41, 1
      %s43 = scalar_select %p40, %s41, %s42
      %p46 = pneg %p40
      %p47 = scmp.eq.s32.totalorder %s17, 1
      %p48 = por %p46, %p47
      %p49 = scmp.ne.s32.totalorder %s41, %s44
      %p50 = scmp.eq.s32.totalorder %s17, 0
      %p51 = por %p49, %p50
      %p52 = scmp.ne.s32.totalorder %s41, %s44
      %p53 = scmp.eq.s32.totalorder %s22, 1
      %p54 = por %p52, %p53
      %p55 = scmp.ne.s32.totalorder %s44, %s45
      %p56 = scmp.eq.s32.totalorder %s22, 0
      %p57 = por %p55, %p56
      %p58 = scmp.ne.s32.totalorder %s44, %s45
      %p59 = scmp.eq.s32.totalorder %s23, 1
      %p60 = por %p58, %p59
      %p62 = scmp.ne.s32.totalorder %s45, %s61
      %p63 = scmp.eq.s32.totalorder %s23, 0
      %p64 = por %p62, %p63
      %s65 = sadd.s32 %s24, %s25
      %s66 = sadd.s32 %s36, %s32
      %s67 = ssub.s32 %s65, %s66
      %p68 = scmp.eq.s32.totalorder %s67, 0
      %s70 = sadd.s32 %s69, 1
      %s71 = scalar_select %p68, %s69, %s70
      %p74 = pneg %p68
      %p75 = scmp.eq.s32.totalorder %s17, 1
      %p76 = por %p74, %p75
      %p77 = scmp.ne.s32.totalorder %s69, %s72
      %p78 = scmp.eq.s32.totalorder %s17, 0
      %p79 = por %p77, %p78
      %p80 = scmp.ne.s32.totalorder %s69, %s72
      %p81 = scmp.eq.s32.totalorder %s22, 1
      %p82 = por %p80, %p81
      %p83 = scmp.ne.s32.totalorder %s72, %s73
      %p84 = scmp.eq.s32.totalorder %s22, 0
      %p85 = por %p83, %p84
      %p86 = scmp.ne.s32.totalorder %s72, %s73
      %p87 = scmp.eq.s32.totalorder %s23, 1
      %p88 = por %p86, %p87
      %p90 = scmp.ne.s32.totalorder %s73, %s89
      %p91 = scmp.eq.s32.totalorder %s23, 0
      %p92 = por %p90, %p91
      %s93 = ssub.s32 %s24, %s36
      %p94 = scmp.eq.s32.totalorder %s93, 0
      %s96 = sadd.s32 %s95, 1
      %s97 = scalar_select %p94, %s95, %s96
      %p100 = pneg %p94
      %p101 = scmp.eq.s32.totalorder %s17, 1
      %p102 = por %p100, %p101
      %p103 = scmp.ne.s32.totalorder %s95, %s98
      %p104 = scmp.eq.s32.totalorder %s17, 0
      %p105 = por %p103, %p104
      %p106 = scmp.ne.s32.totalorder %s95, %s98
      %p107 = scmp.eq.s32.totalorder %s22, 1
      %p108 = por %p106, %p107
      %p109 = scmp.ne.s32.totalorder %s98, %s99
      %p110 = scmp.eq.s32.totalorder %s22, 0
      %p111 = por %p109, %p110
      %p112 = scmp.ne.s32.totalorder %s98, %s99
      %p113 = scmp.eq.s32.totalorder %s23, 1
      %p114 = por %p112, %p113
      %p116 = scmp.ne.s32.totalorder %s99, %s115
      %p117 = scmp.eq.s32.totalorder %s23, 0
      %p118 = por %p116, %p117
      %p119 = scmp.le.s32.totalorder 1, %s17
      %p120 = scmp.lt.s32.totalorder %s17, 3
      %p121 = pnand %p119, %p120
      %p122 = pneg %p121
      // Predicated region
      $region9: #{tpu_custom_call.1} parent=5 // pred_check
        _
      $region10: #{tpu_custom_call.1} parent=5 // pred_check_branch
        %124 = sbr.rel (%p121) target = $region12
      $region11: #{tpu_custom_call.1} parent=5 // pred_region
        %s125 = ssub.s32 %s17, 1
      $region12: #{tpu_custom_call.1} parent=5 // pred_fallthru
        _
      %p126 = scmp.lt.s32.totalorder %s17, 2
      // Predicated region
      $region13: #{tpu_custom_call.1} parent=5 // pred_check
        %p127 = pneg %p126
      $region14: #{tpu_custom_call.1} parent=5 // pred_check_branch
        %129 = sbr.rel (%p127) target = $region16
      $region15: #{tpu_custom_call.1} parent=5 // pred_region
        // Predicated region
        $region17: #{tpu_custom_call.1} parent=15 // pred_check
          %p130 = pneg %p51
        $region18: #{tpu_custom_call.1} parent=15 // pred_check_branch
          %132 = sbr.rel (%p130) target = $region20
        $region19: #{tpu_custom_call.1} parent=15 // pred_region
          %s133 = sand.u32 %s41, 1
          %s134 = scalar_lea.sflag [#allocation3], %s133
          %s135 = sand.u32 %s41, 1
          %s136 = smul.addr %s135, 16
          %s137 = scalar_lea.vmem [#allocation2], %s136
          %s138 = sadd.s32 %s24, %s25
          %s140 = ssub.s32 256, 256
          %141 = vsyncadd %s134, %s140
          %s142 = smul.addr %s138, 128
          %s143 = scalar_lea.hbm %s0, %s142
          %s144 = sshll.u32 %s137, 4
          %s145 = int_to_ptr.vmem [resolvable:$true] %s144
          %150 = dma.hbm_to_vmem [thread:$0]  %s143, 256, %s145, %s134, 256, 128, 8
        $region20: #{tpu_custom_call.1} parent=15 // pred_fallthru
          _
        // Predicated region
        $region21: #{tpu_custom_call.1} parent=15 // pred_check
          %p151 = pneg %p79
        $region22: #{tpu_custom_call.1} parent=15 // pred_check_branch
          %153 = sbr.rel (%p151) target = $region24
        $region23: #{tpu_custom_call.1} parent=15 // pred_region
          %s154 = sand.u32 %s69, 1
          %s155 = scalar_lea.sflag [#allocation6], %s154
          %s156 = sand.u32 %s69, 1
          %s157 = smul.addr %s156, 16
          %s158 = scalar_lea.vmem [#allocation5], %s157
          %s159 = sadd.s32 %s24, %s25
          %s161 = ssub.s32 256, 256
          %162 = vsyncadd %s155, %s161
          %s163 = smul.addr %s159, 128
          %s164 = scalar_lea.hbm %s1, %s163
          %s165 = sshll.u32 %s158, 4
          %s166 = int_to_ptr.vmem [resolvable:$true] %s165
          %171 = dma.hbm_to_vmem [thread:$0]  %s164, 256, %s166, %s155, 256, 128, 8
        $region24: #{tpu_custom_call.1} parent=15 // pred_fallthru
          _
      $region16: #{tpu_custom_call.1} parent=5 // pred_fallthru
        _
      %p172 = scmp.le.s32.totalorder 1, %s17
      %p173 = scmp.lt.s32.totalorder %s17, 3
      %p174 = pnand %p172, %p173
      %p175 = pneg %p174
      // Predicated region
      $region25: #{tpu_custom_call.1} parent=5 // pred_check
        _
      $region26: #{tpu_custom_call.1} parent=5 // pred_check_branch
        %177 = sbr.rel (%p174) target = $region28
      $region27: #{tpu_custom_call.1} parent=5 // pred_region
        %s178 = ssub.s32 %s17, 1
        %s179 = sand.u32 %s44, 1
        %s180 = scalar_lea.sflag [#allocation3], %s179
        %s181 = sand.u32 %s44, 1
        %s182 = smul.addr %s181, 16
        %s183 = scalar_lea.vmem [#allocation2], %s182
        // Predicated region
        $region29: #{tpu_custom_call.1} parent=27 // pred_check
          %p184 = pneg %p57
        $region30: #{tpu_custom_call.1} parent=27 // pred_check_branch
          %186 = sbr.rel (%p184) target = $region32
        $region31: #{tpu_custom_call.1} parent=27 // pred_region
          %187 = dma.done %s180, 256
        $region32: #{tpu_custom_call.1} parent=27 // pred_fallthru
          _
        %s188 = sand.u32 %s72, 1
        %s189 = scalar_lea.sflag [#allocation6], %s188
        %s190 = sand.u32 %s72, 1
        %s191 = smul.addr %s190, 16
        %s192 = scalar_lea.vmem [#allocation5], %s191
        // Predicated region
        $region33: #{tpu_custom_call.1} parent=27 // pred_check
          %p193 = pneg %p85
        $region34: #{tpu_custom_call.1} parent=27 // pred_check_branch
          %195 = sbr.rel (%p193) target = $region36
        $region35: #{tpu_custom_call.1} parent=27 // pred_region
          %196 = dma.done %s189, 256
        $region36: #{tpu_custom_call.1} parent=27 // pred_fallthru
          _
        %s197 = sand.u32 %s44, 1
        %s198 = scalar_lea.sflag [#allocation3], %s197
        %s199 = sand.u32 %s44, 1
        %s200 = smul.addr %s199, 16
        %s201 = scalar_lea.vmem [#allocation2], %s200
        %p202 = pneg %p57
        %p203 = pneg %p54
        %s204 = sand.u32 %s72, 1
        %s205 = scalar_lea.sflag [#allocation6], %s204
        %s206 = sand.u32 %s72, 1
        %s207 = smul.addr %s206, 16
        %s208 = scalar_lea.vmem [#allocation5], %s207
        %p209 = pneg %p85
        %p210 = pneg %p82
        %p211 = pneg %p111
        %p212 = pneg %p108
        %s213 = sand.u32 %s98, 1
        %s214 = scalar_lea.sflag [#allocation4], %s213
        %s215 = sand.u32 %s98, 1
        %s216 = smul.addr %s215, 16
        %s217 = scalar_lea.vmem [#allocation7], %s216
        %s218 = sadd.s32 %s26, %s27
        %s219 = sadd.s32 %s26, %s27
        %p220 = scmp.eq.s32.totalorder %s27, 0
        // Predicated region
        $region37: #{tpu_custom_call.1} parent=27 // pred_check
          %p221 = pneg %p220
        $region38: #{tpu_custom_call.1} parent=27 // pred_check_branch
          %223 = sbr.rel (%p221) target = $region40
        $region39: #{tpu_custom_call.1} parent=27 // pred_region
          %224 = vst [vmem:[%s217] sm:$0xff] 0.0
          %225 = vst [vmem:[%s217 + $0x8] sm:$0xff] 0.0
        $region40: #{tpu_custom_call.1} parent=27 // pred_fallthru
          _
        %v226 = vld [vmem:[%s183] sm:$0xff]
        %v227 = vld [vmem:[%s183 + $0x8] sm:$0xff]
        %v228 = vld [vmem:[%s192] sm:$0xff]
        %v229 = vld [vmem:[%s192 + $0x8] sm:$0xff]
        %v230 = vsub.f32 %v226, %v228
        %v231 = vsub.f32 %v227, %v229
        %v232 = vld [vmem:[%s217] sm:$0xff]
        %v233 = vld [vmem:[%s217 + $0x8] sm:$0xff]
        %v234 = vmul.f32 %v230, %v230
        %v235 = vmul.f32 %v231, %v231
        %v236 = vadd.f32 %v232, %v234
        %v237 = vadd.f32 %v233, %v235
        %238 = vst [vmem:[%s217] sm:$0xff] %v236
        %239 = vst [vmem:[%s217 + $0x8] sm:$0xff] %v237
        %s240 = sand.u32 %s98, 1
        %s241 = scalar_lea.sflag [#allocation4], %s240
        %s242 = sand.u32 %s98, 1
        %s243 = smul.addr %s242, 16
        %s244 = scalar_lea.vmem [#allocation7], %s243
        // Predicated region
        $region41: #{tpu_custom_call.1} parent=27 // pred_check
          %p245 = pneg %p108
        $region42: #{tpu_custom_call.1} parent=27 // pred_check_branch
          %247 = sbr.rel (%p245) target = $region44
        $region43: #{tpu_custom_call.1} parent=27 // pred_region
          %s249 = ssub.s32 256, 256
          %250 = vsyncadd %s241, %s249
          %s251 = smul.addr %s26, 2
          %s252 = smul.addr %s251, 128
          %s253 = scalar_lea.hbm %s2, %s252
          %s254 = sshll.u32 %s244, 4
          %s255 = int_to_ptr.vmem [resolvable:$true] %s254
          %260 = dma.vmem_to_hbm [thread:$0]  %s255, 256, %s253, %s241, 128, 128, 8
        $region44: #{tpu_custom_call.1} parent=27 // pred_fallthru
          _
      $region28: #{tpu_custom_call.1} parent=5 // pred_fallthru
        _
      %p261 = scmp.le.s32.totalorder 2, %s17
      // Predicated region
      $region45: #{tpu_custom_call.1} parent=5 // pred_check
        %p262 = pneg %p261
      $region46: #{tpu_custom_call.1} parent=5 // pred_check_branch
        %264 = sbr.rel (%p262) target = $region48
      $region47: #{tpu_custom_call.1} parent=5 // pred_region
        %s265 = ssub.s32 %s17, 2
        // Predicated region
        $region49: #{tpu_custom_call.1} parent=47 // pred_check
          %p266 = pneg %p114
        $region50: #{tpu_custom_call.1} parent=47 // pred_check_branch
          %268 = sbr.rel (%p266) target = $region52
        $region51: #{tpu_custom_call.1} parent=47 // pred_region
          %s269 = sand.u32 %s99, 1
          %s270 = scalar_lea.sflag [#allocation4], %s269
          %s271 = sand.u32 %s99, 1
          %s272 = smul.addr %s271, 16
          %s273 = scalar_lea.vmem [#allocation7], %s272
          %274 = dma.done %s270, 256
        $region52: #{tpu_custom_call.1} parent=47 // pred_fallthru
          _
      $region48: #{tpu_custom_call.1} parent=5 // pred_fallthru
        _
    $region6: #{tpu_custom_call.1} parent=1 // loop_footer
      %s21 = sadd.s32 1, %s17
    $region7: #{tpu_custom_call.1} parent=1 // loop_footer_branch
      %16 = sbr.rel target = $region3
    $region8: #{tpu_custom_call.1} parent=1 // loop_exit
      _
    %275 = vsyncpa [#allocation3], 1
    %s276 = scalar_lea.sflag [#allocation3], 1
    %277 = vsyncpa %s276, 1
    %278 = vsyncpa [#allocation6], 1
    %s279 = scalar_lea.sflag [#allocation6], 1
    %280 = vsyncpa %s279, 1
    %281 = vsyncpa [#allocation4], 1
    %s282 = scalar_lea.sflag [#allocation4], 1
    %283 = vsyncpa %s282, 1

</llo_original>
